<compile_context>
chip_gen: v5e
topology: v5e:2x2
jax: 0.10.0
libtpu: 0.0.40
codegen_flags: <defaults>
</compile_context>

<pallas_src>
import jax
import jax.numpy as jnp
from jax.experimental import pallas as pl
from jax.experimental.pallas import tpu as pltpu

BN_EPS = 1e-5


def _round_up(a, b):
    return (a + b - 1) // b * b


def _largest_divisor_at_most(n, cap):
    """Largest divisor of n that is <= cap (>= 1). Keeps grid tiles exact."""
    cap = int(max(1, min(n, cap)))
    for t in range(cap, 0, -1):
        if n % t == 0:
            return t
    return 1


def _invariant_spec(block_shape, index_map):
    """Grid-invariant operand: single-buffer it when the API allows (saves the
    wasted second pipeline buffer; falls back silently on older jax)."""
    try:
        return pl.BlockSpec(block_shape, index_map, pipeline_mode=pl.Buffered(1))
    except (AttributeError, TypeError):
        return pl.BlockSpec(block_shape, index_map)


# ---------------------------------------------------------------------------
# Pass 1: per-lane sum and sum-of-squares (f32) accumulated over row tiles.
# Grid = (split, tile); each split owns a resident (1, 1, 2C) output block that
# is initialized at tile 0 and accumulated across the "arbitrary" tile axis.
# ---------------------------------------------------------------------------
def _bn_stats_kernel(x_ref, sum_ref, ssq_ref):
    @pl.when(pl.program_id(1) == 0)
    def _():
        sum_ref[...] = jnp.zeros_like(sum_ref)
        ssq_ref[...] = jnp.zeros_like(ssq_ref)

    x = x_ref[...].astype(jnp.float32)                  # (TR, 2, W2, 2C)
    s = jnp.sum(jnp.sum(x, axis=(0, 1)), axis=0)        # (2C,)
    q = jnp.sum(jnp.sum(x * x, axis=(0, 1)), axis=0)    # (2C,)
    sum_ref[...] += s.reshape(sum_ref.shape)
    ssq_ref[...] += q.reshape(ssq_ref.shape)


# ---------------------------------------------------------------------------
# Pass 2: y = relu(x*scale + shift); p = 2x2 mean pool of y; out = p @ w.
# Lanes carry (dw, c): the w-pair pool is a lane slice, the h-pair pool is a
# leading-axis add, so no sublane-strided ops or transposes are needed.
# ---------------------------------------------------------------------------
def _bn_relu_pool_conv_kernel(x_ref, scale_ref, shift_ref, w_ref, o_ref):
    tr, _, w2, c2 = x_ref.shape
    cin = c2 // 2

    x = x_ref[...].astype(jnp.float32)                          # (TR, 2, W2, 2C)
    y = jnp.maximum(x * scale_ref[...] + shift_ref[...], 0.0)   # f32 fma + ReLU
    yh = y[:, 0] + y[:, 1]                                      # h-pair   (TR, W2, 2C)
    p = (yh[..., :cin] + yh[..., cin:]) * 0.25                  # w-pair   (TR, W2, C)

    p2 = p.reshape(tr * w2, cin).astype(w_ref.dtype)
    out = jnp.dot(p2, w_ref[...], preferred_element_type=jnp.float32)
    o_ref[...] = out.reshape(tr, w2, out.shape[-1]).astype(o_ref.dtype)


def transition_layer(x_nchw, gamma, beta, conv_w, *, matmul_dtype=None,
                     stats_block_bytes=6 << 20, apply_block_bytes=4 << 20):
    """Forward of TransitionLayer.

    x_nchw: (N, C_in, H, W); conv_w: (C_out, C_in, 1, 1).
    Activations stream in their own dtype (bf16 inputs halve HBM traffic and
    use the bf16 MXU path); BN math is always f32.
    """
    N, C, H, W = x_nchw.shape
    Cout = conv_w.shape[0]
    assert H % 2 == 0 and W % 2 == 0, "AvgPool2d(2,2) needs even H and W"
    H2, W2 = H // 2, W // 2
    RH = N * H2                                  # one grid row per (n, h//2)
    count = float(N * H * W)                     # pixels per channel for BN stats
    in_dtype = x_nchw.dtype
    dsize = jnp.dtype(in_dtype).itemsize

    if matmul_dtype is None:
        # Pool-before-conv keeps even the f32 matmul HBM-bound, so match the
        # activation dtype: exact f32 for f32 inputs, bf16 MXU for bf16 inputs.
        matmul_dtype = jnp.bfloat16 if in_dtype == jnp.bfloat16 else jnp.float32

    CoutP = _round_up(Cout, 128)                 # lane-dense output stores

    # --- layout: NCHW -> NHWC (one XLA copy), then a FREE reshape ----------
    # TODO(synk): accept NHWC activations upstream and drop this transpose; it
    # is the only extra HBM pass left (the reshape below is metadata-only).
    x = jnp.transpose(x_nchw, (0, 2, 3, 1))          # (N, H, W, C), same dtype
    x = x.reshape(RH, 2, W2, 2 * C)                  # rows=(n,h2), lanes=(dw,c)

    row_bytes = 2 * W * C * dsize                    # bytes per (n, h2) row

    # --- pass 1: batch statistics -------------------------------------------
    tr1 = _largest_divisor_at_most(RH, max(1, stats_block_bytes // row_bytes))
    tiles1 = RH // tr1
    nsplit = 2 if (tiles1 % 2 == 0 and tiles1 >= 2) else 1   # one split per v7x TC
    tps = tiles1 // nsplit
    f32_blk1 = tr1 * 2 * W * C * 4
    vmem1 = int(min(56 << 20,
                    max(32 << 20, 2 * tr1 * row_bytes + 3 * f32_blk1 + (2 << 20))))

    psum, psq = pl.pallas_call(
        _bn_stats_kernel,
        out_shape=(jax.ShapeDtypeStruct((nsplit, 1, 2 * C), jnp.float32),
                   jax.ShapeDtypeStruct((nsplit, 1, 2 * C), jnp.float32)),
        grid=(nsplit, tps),
        in_specs=[pl.BlockSpec((tr1, 2, W2, 2 * C),
                               lambda s, i: (s * tps + i, 0, 0, 0))],
        out_specs=(pl.BlockSpec((1, 1, 2 * C), lambda s, i: (s, 0, 0)),
                   pl.BlockSpec((1, 1, 2 * C), lambda s, i: (s, 0, 0))),
        compiler_params=pltpu.CompilerParams(
            dimension_semantics=("parallel", "arbitrary"),
            vmem_limit_bytes=vmem1),
    )(x)

    # --- finalize BN affine params once (O(C), outside the hot loops) -------
    s2 = jnp.sum(psum, axis=(0, 1))                  # (2C,)  fold splits
    q2 = jnp.sum(psq, axis=(0, 1))
    sum_c = s2[:C] + s2[C:]                          # fold the two w-offsets
    ssq_c = q2[:C] + q2[C:]
    mean = sum_c / count
    # NOTE: E[x^2]-E[x]^2 in f32 can cancel when |mean| >> std; clamp >= 0 and
    # switch to a two-pass variance if production tolerances ever tighten.
    var = jnp.maximum(ssq_c / count - mean * mean, 0.0)   # biased (training BN)
    inv = jax.lax.rsqrt(var + BN_EPS)
    scale = gamma.astype(jnp.float32) * inv
    shift = beta.astype(jnp.float32) - mean * scale
    scale2 = jnp.tile(scale, 2).reshape(1, 1, 1, 2 * C)   # lanes = (dw, c)
    shift2 = jnp.tile(shift, 2).reshape(1, 1, 1, 2 * C)

    # --- 1x1 conv weight (the 0.25 pool factor is applied in-kernel) --------
    wc = conv_w.reshape(Cout, C).astype(jnp.float32).T               # (C, Cout)
    wc = jnp.pad(wc, ((0, 0), (0, CoutP - Cout))).astype(matmul_dtype)

    # --- pass 2: BN + ReLU + 2x2 mean pool + 1x1 conv -----------------------
    tr2 = _largest_divisor_at_most(RH, max(1, apply_block_bytes // row_bytes))
    tiles2 = RH // tr2
    f32_blk2 = tr2 * 2 * W * C * 4
    out_blk2 = tr2 * W2 * CoutP * dsize
    w_bytes = C * CoutP * jnp.dtype(matmul_dtype).itemsize
    vmem2 = int(min(56 << 20,
                    max(32 << 20, 2 * tr2 * row_bytes + 3 * f32_blk2
                        + 2 * out_blk2 + w_bytes + (2 << 20))))

    out3 = pl.pallas_call(
        _bn_relu_pool_conv_kernel,
        out_shape=jax.ShapeDtypeStruct((RH, W2, CoutP), in_dtype),
        grid=(tiles2,),
        in_specs=[
            pl.BlockSpec((tr2, 2, W2, 2 * C), lambda i: (i, 0, 0, 0)),
            _invariant_spec((1, 1, 1, 2 * C), lambda i: (0, 0, 0, 0)),
            _invariant_spec((1, 1, 1, 2 * C), lambda i: (0, 0, 0, 0)),
            _invariant_spec((C, CoutP), lambda i: (0, 0)),
        ],
        out_specs=pl.BlockSpec((tr2, W2, CoutP), lambda i: (i, 0, 0)),
        compiler_params=pltpu.CompilerParams(
            dimension_semantics=("parallel",),
            vmem_limit_bytes=vmem2),
    )(x, scale2, shift2, wc)

    # --- back to the PyTorch contract: (N, Cout, H/2, W/2) -------------------
    # TODO(synk): return NHWC directly if the consumer allows it; this final
    # transpose touches a tensor 8x smaller than x, so it is a minor cost.
    out = out3[:, :, :Cout].reshape(N, H2, W2, Cout)
    return jnp.transpose(out, (0, 3, 1, 2))


def reference(x_nchw, gamma, beta, conv_w):
    """Pure-JAX reference of the PyTorch forward (training-mode BN)."""
    mean = jnp.mean(x_nchw, axis=(0, 2, 3), keepdims=True)
    var = jnp.var(x_nchw, axis=(0, 2, 3), keepdims=True)  # biased
    y = (x_nchw - mean) / jnp.sqrt(var + BN_EPS)
    y = y * gamma.reshape(1, -1, 1, 1) + beta.reshape(1, -1, 1, 1)
    y = jnp.maximum(y, 0.0)
    z = jnp.einsum("nchw,oc->nohw", y, conv_w.reshape(conv_w.shape[0], -1))
    Nb, Co, H, W = z.shape
    return z.reshape(Nb, Co, H // 2, 2, W // 2, 2).mean(axis=(3, 5))


if __name__ == "__main__":
    key = jax.random.PRNGKey(0)
    k_x, k_g, k_b, k_w = jax.random.split(key, 4)

    N, C_in, H, W = 2, 4, 16, 16
    C_out = 2

    x = jax.random.normal(k_x, (N, C_in, H, W), dtype=jnp.float32)
    gamma = 1.0 + 0.1 * jax.random.normal(k_g, (C_in,), dtype=jnp.float32)
    beta = 0.1 * jax.random.normal(k_b, (C_in,), dtype=jnp.float32)
    conv_w = 0.5 * jax.random.normal(k_w, (C_out, C_in, 1, 1), dtype=jnp.float32)

    out = transition_layer(x, gamma, beta, conv_w)
    out = jax.block_until_ready(out)

    ref = reference(x, gamma, beta, conv_w)
    assert out.shape == (N, C_out, H // 2, W // 2), out.shape
    max_err = float(jnp.max(jnp.abs(out - ref)))
    assert jnp.allclose(out, ref, atol=1e-4, rtol=1e-4), max_err

    print("KERNEL_OK")
</pallas_src>

<mosaic_0001>
module attributes {stable_mosaic.version = 11 : i64} {
  func.func @_bn_stats_kernel(%arg0: i32, %arg1: i32, %arg2: memref<16x2x8x8xf32, #tpu.memory_space<vmem>>, %arg3: memref<1x1x8xf32, #tpu.memory_space<vmem>>, %arg4: memref<1x1x8xf32, #tpu.memory_space<vmem>>) attributes {dimension_semantics = [#tpu.dimension_semantics<parallel>, #tpu.dimension_semantics<arbitrary>], iteration_bounds = array<i64: 1, 1>, scalar_prefetch = 0 : i64, scratch_operands = 0 : i64, tpu.core_type = #tpu.core_type<tc>, window_params = [{transform_indices = @transform_0, window_bounds = array<i64: 16, 2, 8, 8>}, {transform_indices = @transform_1, window_bounds = array<i64: 1, 1, 8>}, {transform_indices = @transform_2, window_bounds = array<i64: 1, 1, 8>}]} {
    %c0_i32 = arith.constant 0 : i32
    %0 = arith.cmpi eq, %arg1, %c0_i32 : i32
    %1 = arith.extui %0 : i1 to i32
    %c0_i32_0 = arith.constant 0 : i32
    %2 = arith.cmpi ne, %1, %c0_i32_0 : i32
    scf.if %2 {
      %cst_19 = arith.constant 0.000000e+00 : f32
      %17 = vector.broadcast %cst_19 : f32 to vector<1x1x8xf32>
      %c0_20 = arith.constant 0 : index
      %c0_21 = arith.constant 0 : index
      %c0_22 = arith.constant 0 : index
      %18 = vector.load %arg3[%c0_20, %c0_21, %c0_22] : memref<1x1x8xf32, #tpu.memory_space<vmem>>, vector<1x1x8xf32>
      tpu.vector_store %arg3[%c0_20, %c0_21, %c0_22], %17 {strides = array<i32>} : memref<1x1x8xf32, #tpu.memory_space<vmem>>, vector<1x1x8xf32>,
      %cst_23 = arith.constant 0.000000e+00 : f32
      %19 = vector.broadcast %cst_23 : f32 to vector<1x1x8xf32>
      %c0_24 = arith.constant 0 : index
      %c0_25 = arith.constant 0 : index
      %c0_26 = arith.constant 0 : index
      %20 = vector.load %arg4[%c0_24, %c0_25, %c0_26] : memref<1x1x8xf32, #tpu.memory_space<vmem>>, vector<1x1x8xf32>
      tpu.vector_store %arg4[%c0_24, %c0_25, %c0_26], %19 {strides = array<i32>} : memref<1x1x8xf32, #tpu.memory_space<vmem>>, vector<1x1x8xf32>,
    } else {
    }
    %c0 = arith.constant 0 : index
    %c0_1 = arith.constant 0 : index
    %c0_2 = arith.constant 0 : index
    %c0_3 = arith.constant 0 : index
    %3 = vector.load %arg2[%c0, %c0_1, %c0_2, %c0_3] : memref<16x2x8x8xf32, #tpu.memory_space<vmem>>, vector<16x2x8x8xf32>
    %cst = arith.constant dense<0.000000e+00> : vector<8x8xf32>
    %4 = vector.multi_reduction <add>, %3, %cst [0, 1] : vector<16x2x8x8xf32> to vector<8x8xf32>
    %cst_4 = arith.constant dense<0.000000e+00> : vector<8xf32>
    %5 = vector.multi_reduction <add>, %4, %cst_4 [0] : vector<8x8xf32> to vector<8xf32>
    %6 = arith.mulf %3, %3 : vector<16x2x8x8xf32>
    %cst_5 = arith.constant dense<0.000000e+00> : vector<8x8xf32>
    %7 = vector.multi_reduction <add>, %6, %cst_5 [0, 1] : vector<16x2x8x8xf32> to vector<8x8xf32>
    %cst_6 = arith.constant dense<0.000000e+00> : vector<8xf32>
    %8 = vector.multi_reduction <add>, %7, %cst_6 [0] : vector<8x8xf32> to vector<8xf32>
    %c0_7 = arith.constant 0 : index
    %c0_8 = arith.constant 0 : index
    %c0_9 = arith.constant 0 : index
    %9 = vector.load %arg3[%c0_7, %c0_8, %c0_9] : memref<1x1x8xf32, #tpu.memory_space<vmem>>, vector<1x1x8xf32>
    %10 = vector.shape_cast %5 : vector<8xf32> to vector<1x1x8xf32>
    %11 = arith.addf %9, %10 : vector<1x1x8xf32>
    %c0_10 = arith.constant 0 : index
    %c0_11 = arith.constant 0 : index
    %c0_12 = arith.constant 0 : index
    %12 = vector.load %arg3[%c0_10, %c0_11, %c0_12] : memref<1x1x8xf32, #tpu.memory_space<vmem>>, vector<1x1x8xf32>
    tpu.vector_store %arg3[%c0_10, %c0_11, %c0_12], %11 {strides = array<i32>} : memref<1x1x8xf32, #tpu.memory_space<vmem>>, vector<1x1x8xf32>,
    %c0_13 = arith.constant 0 : index
    %c0_14 = arith.constant 0 : index
    %c0_15 = arith.constant 0 : index
    %13 = vector.load %arg4[%c0_13, %c0_14, %c0_15] : memref<1x1x8xf32, #tpu.memory_space<vmem>>, vector<1x1x8xf32>
    %14 = vector.shape_cast %8 : vector<8xf32> to vector<1x1x8xf32>
    %15 = arith.addf %13, %14 : vector<1x1x8xf32>
    %c0_16 = arith.constant 0 : index
    %c0_17 = arith.constant 0 : index
    %c0_18 = arith.constant 0 : index
    %16 = vector.load %arg4[%c0_16, %c0_17, %c0_18] : memref<1x1x8xf32, #tpu.memory_space<vmem>>, vector<1x1x8xf32>
    tpu.vector_store %arg4[%c0_16, %c0_17, %c0_18], %15 {strides = array<i32>} : memref<1x1x8xf32, #tpu.memory_space<vmem>>, vector<1x1x8xf32>,
    return
  }
  func.func @transform_0(%arg0: i32, %arg1: i32) -> (i32, i32, i32, i32) {
    %c1_i32 = arith.constant 1 : i32
    %0 = arith.muli %arg0, %c1_i32 : i32
    %1 = arith.addi %0, %arg1 : i32
    %c0_i32 = arith.constant 0 : i32
    %c0_i32_0 = arith.constant 0 : i32
    %c0_i32_1 = arith.constant 0 : i32
    %c0_i32_2 = arith.constant 0 : i32
    return %1, %c0_i32, %c0_i32_0, %c0_i32_1 : i32, i32, i32, i32
  }
  func.func @transform_1(%arg0: i32, %arg1: i32) -> (i32, i32, i32) {
    %c0_i32 = arith.constant 0 : i32
    %c0_i32_0 = arith.constant 0 : i32
    %c0_i32_1 = arith.constant 0 : i32
    return %arg0, %c0_i32, %c0_i32_0 : i32, i32, i32
  }
  func.func @transform_2(%arg0: i32, %arg1: i32) -> (i32, i32, i32) {
    %c0_i32 = arith.constant 0 : i32
    %c0_i32_0 = arith.constant 0 : i32
    %c0_i32_1 = arith.constant 0 : i32
    return %arg0, %c0_i32, %c0_i32_0 : i32, i32, i32
  }
}

</mosaic_0001>

<llo_original>
// kernel: tpu_custom_call.1
$region0: #{tpu_custom_call.1}
  #allocation0 [shape = 'u32[]', space=smem, size = 0x4, offset = 0x4, fixed_abs, tag = 'smem constant byte address 0x4 - core index']
  #allocation1 [shape = 'u32[72,128]{1,0:T(1,128)}', space=vmem, size = 0x9000, scoped, tag = 'internal scratch']
  %s0 = inlined_call_operand.vmem [shape: f32[16,2,8,8], index: 0, kind: input, shape index: {}]
  %s1 = inlined_call_operand.hbm [shape: f32[1,1,8], index: 1, kind: output, shape index: {0}]
  %s2 = inlined_call_operand.hbm [shape: f32[1,1,8], index: 2, kind: output, shape index: {1}]
  %3 = xla_tuple %s1, %s2
  %s4 = sld [smem:[#allocation0]]
  $region26: #{tpu_custom_call.1} parent=0
    _
  %s6 = ssub.s32 1, %s4
  %s7 = scalar_select 0, %s6, %s4
  $region1: #{tpu_custom_call.1} parent=0
    #allocation2 [shape = 'u8[512]{0}', space=vmem, size = 0x400, scoped, tag = 'output window, operand 0, single buffered']
    #allocation3 [shape = 's32[1]{0}', space=sflag, size = 0x4, scoped, tag = 'scoped memory for tpu_custom_call.1']
    #allocation4 [shape = 'u8[512]{0}', space=vmem, size = 0x400, scoped, tag = 'output window, operand 1, single buffered']
    #allocation5 [shape = 's32[1]{0}', space=sflag, size = 0x4, scoped, tag = 'scoped memory for tpu_custom_call.1']
    %8 = vsyncpa [#allocation3], 0
    %9 = vsyncpa [#allocation5], 0
    // Predicated region
    $region2: #{tpu_custom_call.1} parent=1 // pred_check
      _
    $region3: #{tpu_custom_call.1} parent=1 // pred_check_branch
      %11 = sbr.rel (0) target = $region5
    $region4: #{tpu_custom_call.1} parent=1 // pred_region
      %s12 = sadd.s32 0, 0
      %s13 = smul.u32 16, %s12
      %p14 = scmp.lt.s32.totalorder %s13, 15
      %s15 = scalar_select %p14, %s13, 15
      %s16 = smul.addr %s15, 2
      %s17 = smul.addr %s16, 8
      %s18 = scalar_lea.vmem %s0, %s17
      %s19 = sadd.s32 0, 0
      %s20 = smul.u32 16, %s19
    $region5: #{tpu_custom_call.1} parent=1 // pred_fallthru
      _
    %s21 = sadd.s32 0, 0
    %s22 = smul.u32 16, %s21
    %p23 = scmp.lt.s32.totalorder %s22, 15
    %s24 = scalar_select %p23, %s22, 15
    %s25 = smul.addr %s24, 2
    %s26 = smul.addr %s25, 8
    %s27 = scalar_lea.vmem %s0, %s26
    %s28 = sadd.s32 0, 0
    %s29 = smul.u32 16, %s28
    %p30 = scmp.lt.s32.totalorder %s29, 15
    %s31 = scalar_select %p30, %s29, 15
    %s32 = smul.addr %s31, 2
    %s33 = smul.addr %s32, 8
    %s34 = scalar_lea.vmem %s0, %s33
    %s35 = sadd.s32 0, 0
    %s36 = smul.u32 16, %s35
    %p37 = scmp.eq.s32.totalorder 0, 0
    // Predicated region
    $region6: #{tpu_custom_call.1} parent=1 // pred_check
      %p38 = pneg %p37
    $region7: #{tpu_custom_call.1} parent=1 // pred_check_branch
      %40 = sbr.rel (%p38) target = $region9
    $region8: #{tpu_custom_call.1} parent=1 // pred_region
      %vm41 = vcmask 57344
      %42 = vst.msk [vmem:[#allocation2] sm:$0x1] %vm41, 0.0
      %43 = vst.msk [vmem:[#allocation4] sm:$0x1] %vm41, 0.0
    $region9: #{tpu_custom_call.1} parent=1 // pred_fallthru
      _
    %v44 = vld [vmem:[%s34] sm:$0xff]
    %v45 = vld [vmem:[%s34 + $0x8] sm:$0xff]
    %v46 = vld [vmem:[%s34 + $0x10] sm:$0xff]
    %v47 = vld [vmem:[%s34 + $0x18] sm:$0xff]
    %v48 = vld [vmem:[%s34 + $0x20] sm:$0xff]
    %v49 = vld [vmem:[%s34 + $0x28] sm:$0xff]
    %v50 = vld [vmem:[%s34 + $0x30] sm:$0xff]
    %v51 = vld [vmem:[%s34 + $0x38] sm:$0xff]
    %v52 = vld [vmem:[%s34 + $0x40] sm:$0xff]
    %v53 = vld [vmem:[%s34 + $0x48] sm:$0xff]
    %v54 = vld [vmem:[%s34 + $0x50] sm:$0xff]
    %v55 = vld [vmem:[%s34 + $0x58] sm:$0xff]
    %v56 = vld [vmem:[%s34 + $0x60] sm:$0xff]
    %v57 = vld [vmem:[%s34 + $0x68] sm:$0xff]
    %v58 = vld [vmem:[%s34 + $0x70] sm:$0xff]
    %v59 = vld [vmem:[%s34 + $0x78] sm:$0xff]
    %v60 = vld [vmem:[%s34 + $0x80] sm:$0xff]
    %v61 = vld [vmem:[%s34 + $0x88] sm:$0xff]
    %v62 = vld [vmem:[%s34 + $0x90] sm:$0xff]
    %v63 = vld [vmem:[%s34 + $0x98] sm:$0xff]
    %v64 = vld [vmem:[%s34 + $0xa0] sm:$0xff]
    %v65 = vld [vmem:[%s34 + $0xa8] sm:$0xff]
    %v66 = vld [vmem:[%s34 + $0xb0] sm:$0xff]
    %v67 = vld [vmem:[%s34 + $0xb8] sm:$0xff]
    %v68 = vld [vmem:[%s34 + $0xc0] sm:$0xff]
    %v69 = vld [vmem:[%s34 + $0xc8] sm:$0xff]
    %v70 = vld [vmem:[%s34 + $0xd0] sm:$0xff]
    %v71 = vld [vmem:[%s34 + $0xd8] sm:$0xff]
    %v72 = vld [vmem:[%s34 + $0xe0] sm:$0xff]
    %v73 = vld [vmem:[%s34 + $0xe8] sm:$0xff]
    %v74 = vld [vmem:[%s34 + $0xf0] sm:$0xff]
    %v75 = vld [vmem:[%s34 + $0xf8] sm:$0xff]
    %vm76 = vcmask 64512
    %v77 = vsel %vm76, %v44, 0.0
    %v78 = vsel %vm76, %v45, 0.0
    %v79 = vadd.f32 %v77, %v78
    %v80 = vsel %vm76, %v46, 0.0
    %v81 = vadd.f32 %v79, %v80
    %v82 = vsel %vm76, %v47, 0.0
    %v83 = vadd.f32 %v81, %v82
    %v84 = vsel %vm76, %v48, 0.0
    %v85 = vadd.f32 %v83, %v84
    %v86 = vsel %vm76, %v49, 0.0
    %v87 = vadd.f32 %v85, %v86
    %v88 = vsel %vm76, %v50, 0.0
    %v89 = vadd.f32 %v87, %v88
    %v90 = vsel %vm76, %v51, 0.0
    %v91 = vadd.f32 %v89, %v90
    %v92 = vsel %vm76, %v52, 0.0
    %v93 = vadd.f32 %v91, %v92
    %v94 = vsel %vm76, %v53, 0.0
    %v95 = vadd.f32 %v93, %v94
    %v96 = vsel %vm76, %v54, 0.0
    %v97 = vadd.f32 %v95, %v96
    %v98 = vsel %vm76, %v55, 0.0
    %v99 = vadd.f32 %v97, %v98
    %v100 = vsel %vm76, %v56, 0.0
    %v101 = vadd.f32 %v99, %v100
    %v102 = vsel %vm76, %v57, 0.0
    %v103 = vadd.f32 %v101, %v102
    %v104 = vsel %vm76, %v58, 0.0
    %v105 = vadd.f32 %v103, %v104
    %v106 = vsel %vm76, %v59, 0.0
    %v107 = vadd.f32 %v105, %v106
    %v108 = vsel %vm76, %v60, 0.0
    %v109 = vadd.f32 %v107, %v108
    %v110 = vsel %vm76, %v61, 0.0
    %v111 = vadd.f32 %v109, %v110
    %v112 = vsel %vm76, %v62, 0.0
    %v113 = vadd.f32 %v111, %v112
    %v114 = vsel %vm76, %v63, 0.0
    %v115 = vadd.f32 %v113, %v114
    %v116 = vsel %vm76, %v64, 0.0
    %v117 = vadd.f32 %v115, %v116
    %v118 = vsel %vm76, %v65, 0.0
    %v119 = vadd.f32 %v117, %v118
    %v120 = vsel %vm76, %v66, 0.0
    %v121 = vadd.f32 %v119, %v120
    %v122 = vsel %vm76, %v67, 0.0
    %v123 = vadd.f32 %v121, %v122
    %v124 = vsel %vm76, %v68, 0.0
    %v125 = vadd.f32 %v123, %v124
    %v126 = vsel %vm76, %v69, 0.0
    %v127 = vadd.f32 %v125, %v126
    %v128 = vsel %vm76, %v70, 0.0
    %v129 = vadd.f32 %v127, %v128
    %v130 = vsel %vm76, %v71, 0.0
    %v131 = vadd.f32 %v129, %v130
    %v132 = vsel %vm76, %v72, 0.0
    %v133 = vadd.f32 %v131, %v132
    %v134 = vsel %vm76, %v73, 0.0
    %v135 = vadd.f32 %v133, %v134
    %v136 = vsel %vm76, %v74, 0.0
    %v137 = vadd.f32 %v135, %v136
    %v138 = vsel %vm76, %v75, 0.0
    %v139 = vadd.f32 %v137, %v138
    %v140 = vsel %vm76, %v139, 0.0
    %v141 = vrot.slane %v140, 4
    %v142 = vadd.f32 %v140, %v141
    %v143 = vrot.slane %v142, 2
    %v144 = vadd.f32 %v142, %v143
    %v145 = vrot.slane %v144, 1
    %v146 = vadd.f32 %v144, %v145
    %v147 = vmul.f32 %v44, %v44
    %v148 = vmul.f32 %v45, %v45
    %v149 = vmul.f32 %v46, %v46
    %v150 = vmul.f32 %v47, %v47
    %v151 = vmul.f32 %v48, %v48
    %v152 = vmul.f32 %v49, %v49
    %v153 = vmul.f32 %v50, %v50
    %v154 = vmul.f32 %v51, %v51
    %v155 = vmul.f32 %v52, %v52
    %v156 = vmul.f32 %v53, %v53
    %v157 = vmul.f32 %v54, %v54
    %v158 = vmul.f32 %v55, %v55
    %v159 = vmul.f32 %v56, %v56
    %v160 = vmul.f32 %v57, %v57
    %v161 = vmul.f32 %v58, %v58
    %v162 = vmul.f32 %v59, %v59
    %v163 = vmul.f32 %v60, %v60
    %v164 = vmul.f32 %v61, %v61
    %v165 = vmul.f32 %v62, %v62
    %v166 = vmul.f32 %v63, %v63
    %v167 = vmul.f32 %v64, %v64
    %v168 = vmul.f32 %v65, %v65
    %v169 = vmul.f32 %v66, %v66
    %v170 = vmul.f32 %v67, %v67
    %v171 = vmul.f32 %v68, %v68
    %v172 = vmul.f32 %v69, %v69
    %v173 = vmul.f32 %v70, %v70
    %v174 = vmul.f32 %v71, %v71
    %v175 = vmul.f32 %v72, %v72
    %v176 = vmul.f32 %v73, %v73
    %v177 = vmul.f32 %v74, %v74
    %v178 = vmul.f32 %v75, %v75
    %v179 = vsel %vm76, %v147, 0.0
    %v180 = vsel %vm76, %v148, 0.0
    %v181 = vadd.f32 %v179, %v180
    %v182 = vsel %vm76, %v149, 0.0
    %v183 = vadd.f32 %v181, %v182
    %v184 = vsel %vm76, %v150, 0.0
    %v185 = vadd.f32 %v183, %v184
    %v186 = vsel %vm76, %v151, 0.0
    %v187 = vadd.f32 %v185, %v186
    %v188 = vsel %vm76, %v152, 0.0
    %v189 = vadd.f32 %v187, %v188
    %v190 = vsel %vm76, %v153, 0.0
    %v191 = vadd.f32 %v189, %v190
    %v192 = vsel %vm76, %v154, 0.0
    %v193 = vadd.f32 %v191, %v192
    %v194 = vsel %vm76, %v155, 0.0
    %v195 = vadd.f32 %v193, %v194
    %v196 = vsel %vm76, %v156, 0.0
    %v197 = vadd.f32 %v195, %v196
    %v198 = vsel %vm76, %v157, 0.0
    %v199 = vadd.f32 %v197, %v198
    %v200 = vsel %vm76, %v158, 0.0
    %v201 = vadd.f32 %v199, %v200
    %v202 = vsel %vm76, %v159, 0.0
    %v203 = vadd.f32 %v201, %v202
    %v204 = vsel %vm76, %v160, 0.0
    %v205 = vadd.f32 %v203, %v204
    %v206 = vsel %vm76, %v161, 0.0
    %v207 = vadd.f32 %v205, %v206
    %v208 = vsel %vm76, %v162, 0.0
    %v209 = vadd.f32 %v207, %v208
    %v210 = vsel %vm76, %v163, 0.0
    %v211 = vadd.f32 %v209, %v210
    %v212 = vsel %vm76, %v164, 0.0
    %v213 = vadd.f32 %v211, %v212
    %v214 = vsel %vm76, %v165, 0.0
    %v215 = vadd.f32 %v213, %v214
    %v216 = vsel %vm76, %v166, 0.0
    %v217 = vadd.f32 %v215, %v216
    %v218 = vsel %vm76, %v167, 0.0
    %v219 = vadd.f32 %v217, %v218
    %v220 = vsel %vm76, %v168, 0.0
    %v221 = vadd.f32 %v219, %v220
    %v222 = vsel %vm76, %v169, 0.0
    %v223 = vadd.f32 %v221, %v222
    %v224 = vsel %vm76, %v170, 0.0
    %v225 = vadd.f32 %v223, %v224
    %v226 = vsel %vm76, %v171, 0.0
    %v227 = vadd.f32 %v225, %v226
    %v228 = vsel %vm76, %v172, 0.0
    %v229 = vadd.f32 %v227, %v228
    %v230 = vsel %vm76, %v173, 0.0
    %v231 = vadd.f32 %v229, %v230
    %v232 = vsel %vm76, %v174, 0.0
    %v233 = vadd.f32 %v231, %v232
    %v234 = vsel %vm76, %v175, 0.0
    %v235 = vadd.f32 %v233, %v234
    %v236 = vsel %vm76, %v176, 0.0
    %v237 = vadd.f32 %v235, %v236
    %v238 = vsel %vm76, %v177, 0.0
    %v239 = vadd.f32 %v237, %v238
    %v240 = vsel %vm76, %v178, 0.0
    %v241 = vadd.f32 %v239, %v240
    %v242 = vsel %vm76, %v241, 0.0
    %v243 = vrot.slane %v242, 4
    %v244 = vadd.f32 %v242, %v243
    %v245 = vrot.slane %v244, 2
    %v246 = vadd.f32 %v244, %v245
    %v247 = vrot.slane %v246, 1
    %v248 = vadd.f32 %v246, %v247
    %v249 = vld [vmem:[#allocation2] sm:$0x1]
    %v250 = vadd.f32 %v249, %v146
    %vm251 = vcmask 57344
    %252 = vst.msk [vmem:[#allocation2] sm:$0x1] %vm251, %v250
    %v253 = vld [vmem:[#allocation4] sm:$0x1]
    %v254 = vadd.f32 %v253, %v248
    %255 = vst.msk [vmem:[#allocation4] sm:$0x1] %vm251, %v254
    // Predicated region
    $region10: #{tpu_custom_call.1} parent=1 // pred_check
      _
    $region11: #{tpu_custom_call.1} parent=1 // pred_check_branch
      %257 = sbr.rel (0) target = $region13
    $region12: #{tpu_custom_call.1} parent=1 // pred_region
      %259 = vsyncadd [#allocation3], 0
      %s261 = sshll.u32 [#allocation2], 4
      %s262 = int_to_ptr.vmem [resolvable:$true] %s261
      %s263 = sshll.u32 %s1, 4
      %s264 = int_to_ptr.hbm [resolvable:$true] %s263
      %266 = dma.vmem_to_hbm [thread:$0]  %s262, 16, %s264, [#allocation3]
    $region13: #{tpu_custom_call.1} parent=1 // pred_fallthru
      _
    // Predicated region
    $region14: #{tpu_custom_call.1} parent=1 // pred_check
      _
    $region15: #{tpu_custom_call.1} parent=1 // pred_check_branch
      %268 = sbr.rel (0) target = $region17
    $region16: #{tpu_custom_call.1} parent=1 // pred_region
      %270 = vsyncadd [#allocation5], 0
      %s272 = sshll.u32 [#allocation4], 4
      %s273 = int_to_ptr.vmem [resolvable:$true] %s272
      %s274 = sshll.u32 %s2, 4
      %s275 = int_to_ptr.hbm [resolvable:$true] %s274
      %277 = dma.vmem_to_hbm [thread:$0]  %s273, 16, %s275, [#allocation5]
    $region17: #{tpu_custom_call.1} parent=1 // pred_fallthru
      _
    // Predicated region
    $region18: #{tpu_custom_call.1} parent=1 // pred_check
      _
    $region19: #{tpu_custom_call.1} parent=1 // pred_check_branch
      %279 = sbr.rel (0) target = $region21
    $region20: #{tpu_custom_call.1} parent=1 // pred_region
      %281 = dma.done [#allocation3], 16
    $region21: #{tpu_custom_call.1} parent=1 // pred_fallthru
      _
    // Predicated region
    $region22: #{tpu_custom_call.1} parent=1 // pred_check
      _
    $region23: #{tpu_custom_call.1} parent=1 // pred_check_branch
      %283 = sbr.rel (0) target = $region25
    $region24: #{tpu_custom_call.1} parent=1 // pred_region
      %285 = dma.done [#allocation5], 16
    $region25: #{tpu_custom_call.1} parent=1 // pred_fallthru
      _
    %286 = vsyncpa [#allocation3], 1
    %287 = vsyncpa [#allocation5], 1

</llo_original>
